<compile_context>
chip_gen: v7x
topology: tpu7x:2x2x1
jax: 0.10.0
libtpu: 0.0.40
codegen_flags: <defaults>
</compile_context>

<pallas_src>
import functools

import jax
import jax.numpy as jnp
from jax.experimental import pallas as pl
from jax.experimental.pallas import tpu as pltpu

_H1 = 256          # fc1 / fc2 width
_H3 = 128          # fc3 width padded from 64 -> 128 lanes (exact, zero-padded)


# ---------------------------------------------------------------------------
# Pallas kernel: fused 4x (matmul + bias) with ReLU between layers.
# One grid step processes TILE_B rows of the batch.
# ---------------------------------------------------------------------------
def _relation_net2_kernel(
    x_ref,      # (TILE_B, F)      f32   (cast to bf16 in-kernel)
    w1_ref,     # (F, 256)         bf16
    b1_ref,     # (1, 256)         f32
    w2_ref,     # (256, 256)       bf16
    b2_ref,     # (1, 256)         f32
    w3_ref,     # (256, 128)       bf16  (cols 64..127 are zero)
    b3_ref,     # (1, 128)         f32   (cols 64..127 are zero)
    w4_ref,     # (1, 128)         f32   (cols 64..127 are zero)
    b4_ref,     # (1, 1)           f32
    o_ref,      # (TILE_B, 1)      f32
):
    # In-kernel cast: hides under the fc1 MXU pass, removes the wrapper pre-pass.
    x = x_ref[...].astype(jnp.bfloat16)

    h = jnp.dot(x, w1_ref[...], preferred_element_type=jnp.float32)
    h = jnp.maximum(h + b1_ref[...], 0.0)

    h = jnp.dot(h.astype(jnp.bfloat16), w2_ref[...],
                preferred_element_type=jnp.float32)
    h = jnp.maximum(h + b2_ref[...], 0.0)

    h = jnp.dot(h.astype(jnp.bfloat16), w3_ref[...],
                preferred_element_type=jnp.float32)
    h = jnp.maximum(h + b3_ref[...], 0.0)                                 # (TILE_B, 128)

    # fc4: (TILE_B,128) @ (128,1) done off the MXU: VPU multiply + XLU lane-reduce.
    p = h * w4_ref[...]                                                   # (TILE_B, 128) f32
    out = jnp.sum(p, axis=-1, keepdims=True) + b4_ref[...]                # (TILE_B, 1)

    o_ref[...] = out.astype(o_ref.dtype)


# ---------------------------------------------------------------------------
# Helpers
# ---------------------------------------------------------------------------
def _choose_tile_b(batch, f):
    # Double-buffered f32 x tile budget ~16 MiB; cap rows at 1024 so the whole
    # working set (x tiles + resident weights + f32 activations) stays well
    # inside v7x's 64 MiB per-TC VMEM while amortizing per-step overhead on
    # v5e/v6e (128 MiB VMEM).
    cap = (16 * 1024 * 1024) // (2 * 4 * max(f, 1))
    cap = max(16, (cap // 16) * 16)      # multiple of 16: native bf16 (16,128) tile
    cap = min(1024, cap)
    if batch <= cap:
        return batch                     # single full-extent block, no masking
    return cap                           # last block may be partial (rows independent)


def prepare_params(params):
    """One-time parameter prep: bf16 matmul weights, 64->128 lane padding for
    fc3/fc4, fc4 reshaped to a (1, 128) f32 row for the VPU/XLU epilogue."""
    w1 = params["w1"].astype(jnp.bfloat16)
    w2 = params["w2"].astype(jnp.bfloat16)

    h3 = params["w3"].shape[1]
    w3 = jnp.pad(params["w3"], ((0, 0), (0, _H3 - h3))).astype(jnp.bfloat16)
    b3 = jnp.pad(params["b3"], ((0, 0), (0, _H3 - h3))).astype(jnp.float32)

    w4 = jnp.pad(params["w4"], ((0, _H3 - params["w4"].shape[0]), (0, 0)))
    w4_row = w4.reshape(1, _H3).astype(jnp.float32)

    return {
        "w1": w1, "b1": params["b1"].astype(jnp.float32),
        "w2": w2, "b2": params["b2"].astype(jnp.float32),
        "w3": w3, "b3": b3,
        "w4_row": w4_row, "b4": params["b4"].astype(jnp.float32),
    }


# ---------------------------------------------------------------------------
# Forward wrapper
# ---------------------------------------------------------------------------
@functools.partial(jax.jit, static_argnames=("is_summary",))
def relation_network2_forward(x, prepped, is_summary=False):
    """JAX/Pallas equivalent of RelationNetwork2.forward.

    x: (B, C, H, W) float32 (NCHW, flattened inside like torch's x.view(B,-1)).
    prepped: output of prepare_params(params).
    Returns (out, {'x': x} if is_summary else None), out shape (B, 1).
    """
    b = x.shape[0]
    x_flat = x.reshape(b, -1)            # free reshape: NO cast, NO pad in HBM
    f = x_flat.shape[1]
    assert prepped["w1"].shape[0] == f, (prepped["w1"].shape, f)

    tile_b = _choose_tile_b(b, f)
    grid = (pl.cdiv(b, tile_b),)

    # VMEM budget: double-buffered f32 x tile + resident (double-buffered)
    # weights/biases + f32 activations; clamp below 48 MiB for v7x headroom.
    bytes_x = 2 * tile_b * f * 4
    bytes_w = 2 * ((f * _H1 + _H1 * _H1 + _H1 * _H3) * 2 + _H3 * 4
                   + (_H1 + _H1 + _H3 + 1) * 4)
    bytes_out = 2 * tile_b * 4
    bytes_act = tile_b * (_H1 + _H1 + _H3 + _H3) * 4
    vmem_limit = bytes_x + bytes_w + bytes_out + bytes_act + (4 << 20)
    vmem_limit = int(min(max(vmem_limit, 16 << 20), 48 << 20))

    flops = 2 * b * (f * _H1 + _H1 * _H1 + _H1 * 64 + 64)
    bytes_accessed = (b * f * 4                                   # f32 x read
                      + (f * _H1 + _H1 * _H1 + _H1 * _H3) * 2     # bf16 weights
                      + (_H1 + _H1 + _H3 + _H3 + 1) * 4           # f32 biases + w4 row
                      + b * 4)                                    # f32 output

    out = pl.pallas_call(
        _relation_net2_kernel,
        out_shape=jax.ShapeDtypeStruct((b, 1), jnp.float32),
        grid=grid,
        in_specs=[
            pl.BlockSpec((tile_b, f), lambda i: (i, 0)),   # x tile (f32, streamed)
            pl.BlockSpec((f, _H1), lambda i: (0, 0)),      # w1 (resident)
            pl.BlockSpec((1, _H1), lambda i: (0, 0)),      # b1
            pl.BlockSpec((_H1, _H1), lambda i: (0, 0)),    # w2
            pl.BlockSpec((1, _H1), lambda i: (0, 0)),      # b2
            pl.BlockSpec((_H1, _H3), lambda i: (0, 0)),    # w3 (lane-padded)
            pl.BlockSpec((1, _H3), lambda i: (0, 0)),      # b3 (lane-padded)
            pl.BlockSpec((1, _H3), lambda i: (0, 0)),      # w4 row (lane-padded)
            pl.BlockSpec((1, 1), lambda i: (0, 0)),        # b4
        ],
        out_specs=pl.BlockSpec((tile_b, 1), lambda i: (i, 0)),
        compiler_params=pltpu.CompilerParams(
            dimension_semantics=("parallel",),
            vmem_limit_bytes=vmem_limit,
        ),
        cost_estimate=pl.CostEstimate(
            flops=flops, transcendentals=0, bytes_accessed=bytes_accessed),
    )(
        x_flat,
        prepped["w1"], prepped["b1"],
        prepped["w2"], prepped["b2"],
        prepped["w3"], prepped["b3"],
        prepped["w4_row"], prepped["b4"],
    )

    return out, ({"x": x} if is_summary else None)


# ---------------------------------------------------------------------------
# Deterministic parameter init (PyTorch nn.Linear-style uniform bounds).
# ---------------------------------------------------------------------------
def init_params(key, input_size):
    dims = [(input_size, 256), (256, 256), (256, 64), (64, 1)]
    params = {}
    for i, (fan_in, fan_out) in enumerate(dims, start=1):
        key, kw, kb = jax.random.split(key, 3)
        bound = 1.0 / (fan_in ** 0.5)
        params[f"w{i}"] = jax.random.uniform(
            kw, (fan_in, fan_out), jnp.float32, minval=-bound, maxval=bound)
        params[f"b{i}"] = jax.random.uniform(
            kb, (1, fan_out), jnp.float32, minval=-bound, maxval=bound)
    return params


# Pure-JAX reference with the same bf16 quantization points as the kernel.
def _reference_forward(x, params):
    def q(a):
        return a.astype(jnp.bfloat16).astype(jnp.float32)
    h = q(x.reshape(x.shape[0], -1))
    h = jnp.maximum(h @ q(params["w1"]) + params["b1"], 0.0)
    h = jnp.maximum(q(h) @ q(params["w2"]) + params["b2"], 0.0)
    h = jnp.maximum(q(h) @ q(params["w3"]) + params["b3"], 0.0)
    return h @ params["w4"] + params["b4"]


if __name__ == "__main__":
    key = jax.random.PRNGKey(0)
    k_x, k_p = jax.random.split(key)

    # Small shapes consistent with the module: x is NCHW, flattened inside.
    B, C, H, W = 2, 4, 16, 16
    input_size = C * H * W  # 1024

    x = jax.random.normal(k_x, (B, C, H, W), dtype=jnp.float32)
    params = init_params(k_p, input_size)
    prepped = prepare_params(params)

    out, summary = relation_network2_forward(x, prepped, is_summary=True)
    out = jax.block_until_ready(out)

    assert out.shape == (B, 1), out.shape
    assert summary is not None and summary["x"].shape == (B, C, H, W)

    ref = _reference_forward(x, params)
    assert jnp.allclose(out, ref, rtol=1e-2, atol=1e-2), (out, ref)

    print("KERNEL_OK")
</pallas_src>

<mosaic_0001>
module attributes {stable_mosaic.version = 11 : i64} {
  func.func @_relation_net2_kernel(%arg0: i32, %arg1: memref<2x1024xf32, #tpu.memory_space<vmem>>, %arg2: memref<1024x256xbf16, #tpu.memory_space<vmem>>, %arg3: memref<1x256xf32, #tpu.memory_space<vmem>>, %arg4: memref<256x256xbf16, #tpu.memory_space<vmem>>, %arg5: memref<1x256xf32, #tpu.memory_space<vmem>>, %arg6: memref<256x128xbf16, #tpu.memory_space<vmem>>, %arg7: memref<1x128xf32, #tpu.memory_space<vmem>>, %arg8: memref<1x128xf32, #tpu.memory_space<vmem>>, %arg9: memref<1x1xf32, #tpu.memory_space<vmem>>, %arg10: memref<2x1xf32, #tpu.memory_space<vmem>>) attributes {dimension_semantics = [#tpu.dimension_semantics<parallel>], iteration_bounds = array<i64: 1>, scalar_prefetch = 0 : i64, scratch_operands = 0 : i64, tpu.core_type = #tpu.core_type<tc>, window_params = [{transform_indices = @transform_0, window_bounds = array<i64: 2, 1024>}, {pipeline_mode = #tpu.pipeline_mode<synchronous>, transform_indices = @transform_1, window_bounds = array<i64: 1024, 256>}, {pipeline_mode = #tpu.pipeline_mode<synchronous>, transform_indices = @transform_2, window_bounds = array<i64: 1, 256>}, {pipeline_mode = #tpu.pipeline_mode<synchronous>, transform_indices = @transform_3, window_bounds = array<i64: 256, 256>}, {pipeline_mode = #tpu.pipeline_mode<synchronous>, transform_indices = @transform_4, window_bounds = array<i64: 1, 256>}, {pipeline_mode = #tpu.pipeline_mode<synchronous>, transform_indices = @transform_5, window_bounds = array<i64: 256, 128>}, {pipeline_mode = #tpu.pipeline_mode<synchronous>, transform_indices = @transform_6, window_bounds = array<i64: 1, 128>}, {pipeline_mode = #tpu.pipeline_mode<synchronous>, transform_indices = @transform_7, window_bounds = array<i64: 1, 128>}, {pipeline_mode = #tpu.pipeline_mode<synchronous>, transform_indices = @transform_8, window_bounds = array<i64: 1, 1>}, {transform_indices = @transform_9, window_bounds = array<i64: 2, 1>}]} {
    %c0 = arith.constant 0 : index
    %c0_0 = arith.constant 0 : index
    %0 = vector.load %arg1[%c0, %c0_0] : memref<2x1024xf32, #tpu.memory_space<vmem>>, vector<2x1024xf32>
    %1 = arith.truncf %0 : vector<2x1024xf32> to vector<2x1024xbf16>
    %c0_1 = arith.constant 0 : index
    %c0_2 = arith.constant 0 : index
    %2 = vector.load %arg2[%c0_1, %c0_2] : memref<1024x256xbf16, #tpu.memory_space<vmem>>, vector<1024x256xbf16>
    %cst = arith.constant dense<0.000000e+00> : vector<2x256xf32>
    %3 = tpu.matmul %1, %2, %cst {dimension_numbers = #tpu.dot_dimension_numbers<[1], [0], [0], [1], [0, 0, 1, 1], [], []>} : vector<2x1024xbf16>, vector<1024x256xbf16>, vector<2x256xf32> -> vector<2x256xf32>
    %c0_3 = arith.constant 0 : index
    %c0_4 = arith.constant 0 : index
    %4 = vector.load %arg3[%c0_3, %c0_4] : memref<1x256xf32, #tpu.memory_space<vmem>>, vector<1x256xf32>
    %5 = vector.broadcast %4 : vector<1x256xf32> to vector<2x256xf32>
    %6 = arith.addf %3, %5 : vector<2x256xf32>
    %cst_5 = arith.constant 0.000000e+00 : f32
    %7 = vector.broadcast %cst_5 : f32 to vector<2x256xf32>
    %8 = arith.maximumf %6, %7 : vector<2x256xf32>
    %9 = arith.truncf %8 : vector<2x256xf32> to vector<2x256xbf16>
    %c0_6 = arith.constant 0 : index
    %c0_7 = arith.constant 0 : index
    %10 = vector.load %arg4[%c0_6, %c0_7] : memref<256x256xbf16, #tpu.memory_space<vmem>>, vector<256x256xbf16>
    %cst_8 = arith.constant dense<0.000000e+00> : vector<2x256xf32>
    %11 = tpu.matmul %9, %10, %cst_8 {dimension_numbers = #tpu.dot_dimension_numbers<[1], [0], [0], [1], [0, 0, 1, 1], [], []>} : vector<2x256xbf16>, vector<256x256xbf16>, vector<2x256xf32> -> vector<2x256xf32>
    %c0_9 = arith.constant 0 : index
    %c0_10 = arith.constant 0 : index
    %12 = vector.load %arg5[%c0_9, %c0_10] : memref<1x256xf32, #tpu.memory_space<vmem>>, vector<1x256xf32>
    %13 = vector.broadcast %12 : vector<1x256xf32> to vector<2x256xf32>
    %14 = arith.addf %11, %13 : vector<2x256xf32>
    %cst_11 = arith.constant 0.000000e+00 : f32
    %15 = vector.broadcast %cst_11 : f32 to vector<2x256xf32>
    %16 = arith.maximumf %14, %15 : vector<2x256xf32>
    %17 = arith.truncf %16 : vector<2x256xf32> to vector<2x256xbf16>
    %c0_12 = arith.constant 0 : index
    %c0_13 = arith.constant 0 : index
    %18 = vector.load %arg6[%c0_12, %c0_13] : memref<256x128xbf16, #tpu.memory_space<vmem>>, vector<256x128xbf16>
    %cst_14 = arith.constant dense<0.000000e+00> : vector<2x128xf32>
    %19 = tpu.matmul %17, %18, %cst_14 {dimension_numbers = #tpu.dot_dimension_numbers<[1], [0], [0], [1], [0, 0, 1, 1], [], []>} : vector<2x256xbf16>, vector<256x128xbf16>, vector<2x128xf32> -> vector<2x128xf32>
    %c0_15 = arith.constant 0 : index
    %c0_16 = arith.constant 0 : index
    %20 = vector.load %arg7[%c0_15, %c0_16] : memref<1x128xf32, #tpu.memory_space<vmem>>, vector<1x128xf32>
    %21 = vector.broadcast %20 : vector<1x128xf32> to vector<2x128xf32>
    %22 = arith.addf %19, %21 : vector<2x128xf32>
    %cst_17 = arith.constant 0.000000e+00 : f32
    %23 = vector.broadcast %cst_17 : f32 to vector<2x128xf32>
    %24 = arith.maximumf %22, %23 : vector<2x128xf32>
    %c0_18 = arith.constant 0 : index
    %c0_19 = arith.constant 0 : index
    %25 = vector.load %arg8[%c0_18, %c0_19] : memref<1x128xf32, #tpu.memory_space<vmem>>, vector<1x128xf32>
    %26 = vector.broadcast %25 : vector<1x128xf32> to vector<2x128xf32>
    %27 = arith.mulf %24, %26 : vector<2x128xf32>
    %cst_20 = arith.constant dense<0.000000e+00> : vector<2xf32>
    %28 = vector.multi_reduction <add>, %27, %cst_20 [1] : vector<2x128xf32> to vector<2xf32>
    %29 = vector.shape_cast %28 : vector<2xf32> to vector<2x1xf32>
    %c0_21 = arith.constant 0 : index
    %c0_22 = arith.constant 0 : index
    %30 = vector.load %arg9[%c0_21, %c0_22] : memref<1x1xf32, #tpu.memory_space<vmem>>, vector<1x1xf32>
    %31 = vector.broadcast %30 : vector<1x1xf32> to vector<2x1xf32>
    %32 = arith.addf %29, %31 : vector<2x1xf32>
    %c0_23 = arith.constant 0 : index
    %c0_24 = arith.constant 0 : index
    %33 = vector.load %arg10[%c0_23, %c0_24] : memref<2x1xf32, #tpu.memory_space<vmem>>, vector<2x1xf32>
    tpu.vector_store %arg10[%c0_23, %c0_24], %32 {strides = array<i32>} : memref<2x1xf32, #tpu.memory_space<vmem>>, vector<2x1xf32>,
    return
  }
  func.func @transform_0(%arg0: i32) -> (i32, i32) {
    %c0_i32 = arith.constant 0 : i32
    %c0_i32_0 = arith.constant 0 : i32
    return %arg0, %c0_i32 : i32, i32
  }
  func.func @transform_1(%arg0: i32) -> (i32, i32) {
    %c0_i32 = arith.constant 0 : i32
    %c0_i32_0 = arith.constant 0 : i32
    %c0_i32_1 = arith.constant 0 : i32
    return %c0_i32, %c0_i32_0 : i32, i32
  }
  func.func @transform_2(%arg0: i32) -> (i32, i32) {
    %c0_i32 = arith.constant 0 : i32
    %c0_i32_0 = arith.constant 0 : i32
    %c0_i32_1 = arith.constant 0 : i32
    return %c0_i32, %c0_i32_0 : i32, i32
  }
  func.func @transform_3(%arg0: i32) -> (i32, i32) {
    %c0_i32 = arith.constant 0 : i32
    %c0_i32_0 = arith.constant 0 : i32
    %c0_i32_1 = arith.constant 0 : i32
    return %c0_i32, %c0_i32_0 : i32, i32
  }
  func.func @transform_4(%arg0: i32) -> (i32, i32) {
    %c0_i32 = arith.constant 0 : i32
    %c0_i32_0 = arith.constant 0 : i32
    %c0_i32_1 = arith.constant 0 : i32
    return %c0_i32, %c0_i32_0 : i32, i32
  }
  func.func @transform_5(%arg0: i32) -> (i32, i32) {
    %c0_i32 = arith.constant 0 : i32
    %c0_i32_0 = arith.constant 0 : i32
    %c0_i32_1 = arith.constant 0 : i32
    return %c0_i32, %c0_i32_0 : i32, i32
  }
  func.func @transform_6(%arg0: i32) -> (i32, i32) {
    %c0_i32 = arith.constant 0 : i32
    %c0_i32_0 = arith.constant 0 : i32
    %c0_i32_1 = arith.constant 0 : i32
    return %c0_i32, %c0_i32_0 : i32, i32
  }
  func.func @transform_7(%arg0: i32) -> (i32, i32) {
    %c0_i32 = arith.constant 0 : i32
    %c0_i32_0 = arith.constant 0 : i32
    %c0_i32_1 = arith.constant 0 : i32
    return %c0_i32, %c0_i32_0 : i32, i32
  }
  func.func @transform_8(%arg0: i32) -> (i32, i32) {
    %c0_i32 = arith.constant 0 : i32
    %c0_i32_0 = arith.constant 0 : i32
    %c0_i32_1 = arith.constant 0 : i32
    return %c0_i32, %c0_i32_0 : i32, i32
  }
  func.func @transform_9(%arg0: i32) -> (i32, i32) {
    %c0_i32 = arith.constant 0 : i32
    %c0_i32_0 = arith.constant 0 : i32
    return %arg0, %c0_i32 : i32, i32
  }
}

</mosaic_0001>

<llo_original>
// kernel: relation_network2_forward.1
$region0: #{relation_network2_forward.1}
  #allocation0 [shape = 'u32[]', space=smem, size = 0x4, offset = 0x4, fixed_abs, tag = 'smem constant byte address 0x4 - core index']
  #allocation1 [shape = 'u32[144,128]{1,0:T(1,128)}', space=vmem, size = 0x12000, scoped, tag = 'internal scratch']
  #allocation2 [shape = 'f32[1,1]{1,0:T(1,128)S(1)}', space=vmem, size = 0x200, scoped, tag = 'scoped memory for relation_network2_forward.1']
  %s0 = inlined_call_operand.vmem [shape: f32[2,1024], index: 0, kind: input, shape index: {}]
  %s1 = inlined_call_operand.hbm [shape: bf16[1024,256], index: 1, kind: input, shape index: {}]
  %s2 = inlined_call_operand.vmem [shape: f32[1,256], index: 2, kind: input, shape index: {}]
  %s3 = inlined_call_operand.hbm [shape: bf16[256,256], index: 3, kind: input, shape index: {}]
  %s4 = inlined_call_operand.vmem [shape: f32[1,256], index: 4, kind: input, shape index: {}]
  %s5 = inlined_call_operand.vmem [shape: bf16[256,128], index: 5, kind: input, shape index: {}]
  %s6 = inlined_call_operand.vmem [shape: f32[1,128], index: 6, kind: input, shape index: {}]
  %s7 = inlined_call_operand.vmem [shape: f32[1,128], index: 7, kind: input, shape index: {}]
  %s8 = inlined_call_operand.<no memory space> [shape: f32[1,1], index: 8, kind: input, shape index: {}]
  %s9 = inlined_call_operand.vmem [shape: f32[2,1], index: 9, kind: output, shape index: {}]
  %s10 = sld [smem:[#allocation0]]
  $region54: #{relation_network2_forward.1} parent=0
    _
  %s12 = ssub.s32 1, %s10
  %s13 = scalar_select 0, %s12, %s10
  %v14 = vstv %s8
  %15 = vst [vmem:[#allocation2] sm:$0x1] %v14
  $region1: #{relation_network2_forward.1} parent=0
    #allocation3 [shape = 'u8[524288]{0}', space=vmem, size = 0x80000, scoped, tag = 'input window, operand 1, single buffered']
    #allocation4 [shape = 's32[1]{0}', space=sflag, size = 0x4, scoped, tag = 'scoped memory for relation_network2_forward.1']
    #allocation5 [shape = 'u8[131072]{0}', space=vmem, size = 0x20000, scoped, tag = 'input window, operand 3, single buffered']
    #allocation6 [shape = 's32[1]{0}', space=sflag, size = 0x4, scoped, tag = 'scoped memory for relation_network2_forward.1']
    %16 = vsyncpa [#allocation4], 0
    %17 = vsyncpa [#allocation6], 0
    // Predicated region
    $region2: #{relation_network2_forward.1} parent=1 // pred_check
      _
    $region3: #{relation_network2_forward.1} parent=1 // pred_check_branch
      %19 = sbr.rel (0) target = $region5
    $region4: #{relation_network2_forward.1} parent=1 // pred_region
      _
    $region5: #{relation_network2_forward.1} parent=1 // pred_fallthru
      _
    // Predicated region
    $region6: #{relation_network2_forward.1} parent=1 // pred_check
      _
    $region7: #{relation_network2_forward.1} parent=1 // pred_check_branch
      %21 = sbr.rel (0) target = $region9
    $region8: #{relation_network2_forward.1} parent=1 // pred_region
      %s23 = ssub.s32 16384, 16384
      %24 = vsyncadd [#allocation4], %s23
      %s25 = sshll.u32 [#allocation3], 4
      %s26 = int_to_ptr.vmem [resolvable:$true] %s25
      %31 = dma.hbm_to_vmem [thread:$0]  %s1, 16384, %s26, [#allocation4], 128, 128, 8
    $region9: #{relation_network2_forward.1} parent=1 // pred_fallthru
      _
    // Predicated region
    $region10: #{relation_network2_forward.1} parent=1 // pred_check
      _
    $region11: #{relation_network2_forward.1} parent=1 // pred_check_branch
      %33 = sbr.rel (0) target = $region13
    $region12: #{relation_network2_forward.1} parent=1 // pred_region
      _
    $region13: #{relation_network2_forward.1} parent=1 // pred_fallthru
      _
    // Predicated region
    $region14: #{relation_network2_forward.1} parent=1 // pred_check
      _
    $region15: #{relation_network2_forward.1} parent=1 // pred_check_branch
      %35 = sbr.rel (0) target = $region17
    $region16: #{relation_network2_forward.1} parent=1 // pred_region
      %s37 = ssub.s32 4096, 4096
      %38 = vsyncadd [#allocation6], %s37
      %s39 = sshll.u32 [#allocation5], 4
      %s40 = int_to_ptr.vmem [resolvable:$true] %s39
      %45 = dma.hbm_to_vmem [thread:$0]  %s3, 4096, %s40, [#allocation6], 128, 128, 8
    $region17: #{relation_network2_forward.1} parent=1 // pred_fallthru
      _
    // Predicated region
    $region18: #{relation_network2_forward.1} parent=1 // pred_check
      _
    $region19: #{relation_network2_forward.1} parent=1 // pred_check_branch
      %47 = sbr.rel (0) target = $region21
    $region20: #{relation_network2_forward.1} parent=1 // pred_region
      _
    $region21: #{relation_network2_forward.1} parent=1 // pred_fallthru
      _
    // Predicated region
    $region22: #{relation_network2_forward.1} parent=1 // pred_check
      _
    $region23: #{relation_network2_forward.1} parent=1 // pred_check_branch
      %49 = sbr.rel (0) target = $region25
    $region24: #{relation_network2_forward.1} parent=1 // pred_region
      _
    $region25: #{relation_network2_forward.1} parent=1 // pred_fallthru
      _
    // Predicated region
    $region26: #{relation_network2_forward.1} parent=1 // pred_check
      _
    $region27: #{relation_network2_forward.1} parent=1 // pred_check_branch
      %51 = sbr.rel (0) target = $region29
    $region28: #{relation_network2_forward.1} parent=1 // pred_region
      _
    $region29: #{relation_network2_forward.1} parent=1 // pred_fallthru
      _
    // Predicated region
    $region30: #{relation_network2_forward.1} parent=1 // pred_check
      _
    $region31: #{relation_network2_forward.1} parent=1 // pred_check_branch
      %53 = sbr.rel (0) target = $region33
    $region32: #{relation_network2_forward.1} parent=1 // pred_region
      _
    $region33: #{relation_network2_forward.1} parent=1 // pred_fallthru
      _
    // Predicated region
    $region34: #{relation_network2_forward.1} parent=1 // pred_check
      _
    $region35: #{relation_network2_forward.1} parent=1 // pred_check_branch
      %55 = sbr.rel (0) target = $region37
    $region36: #{relation_network2_forward.1} parent=1 // pred_region
      _
    $region37: #{relation_network2_forward.1} parent=1 // pred_fallthru
      _
    // Predicated region
    $region38: #{relation_network2_forward.1} parent=1 // pred_check
      _
    $region39: #{relation_network2_forward.1} parent=1 // pred_check_branch
      %57 = sbr.rel (0) target = $region41
    $region40: #{relation_network2_forward.1} parent=1 // pred_region
      %58 = dma.done [#allocation4], 16384
    $region41: #{relation_network2_forward.1} parent=1 // pred_fallthru
      _
    // Predicated region
    $region42: #{relation_network2_forward.1} parent=1 // pred_check
      _
    $region43: #{relation_network2_forward.1} parent=1 // pred_check_branch
      %60 = sbr.rel (0) target = $region45
    $region44: #{relation_network2_forward.1} parent=1 // pred_region
      %61 = dma.done [#allocation6], 4096
    $region45: #{relation_network2_forward.1} parent=1 // pred_fallthru
      _
    %v63 = vld [vmem:[%s0] sm:$0xff]
    %v64 = vld [vmem:[%s0 + $0x8] sm:$0xff]
    %v67 = vcombine.high %v63, %v63
    %v69 = vunpack.c.l.s4 1983009808
    %v70 = vunpack.c.0.s8 %v69
    %v71 = vlaneseq
    %v72 = vshrl.u32 %v71, 7
    %v73 = vsub.s32 %v70, %v72
    %v74 = vrot.slane %v63, %v73
    %v76 = vunpack.c.l.s4 1983009808
    %v77 = vunpack.c.0.s8 %v76
    %v78 = vlaneseq
    %v79 = vshrl.u32 %v78, 7
    %v80 = vsub.s32 %v77, %v79
    %v81 = vrot.slane %v67, %v80
    %v82 = vcombine.high %v74, %v74
    %v83 = vcombine.high %v81, %v81
    %v84 = vcombine.high %v64, %v64
    %v86 = vunpack.c.l.s4 1983009808
    %v87 = vunpack.c.0.s8 %v86
    %v88 = vlaneseq
    %v89 = vshrl.u32 %v88, 7
    %v90 = vsub.s32 %v87, %v89
    %v91 = vrot.slane %v64, %v90
    %v93 = vunpack.c.l.s4 1983009808
    %v94 = vunpack.c.0.s8 %v93
    %v95 = vlaneseq
    %v96 = vshrl.u32 %v95, 7
    %v97 = vsub.s32 %v94, %v96
    %v98 = vrot.slane %v84, %v97
    %v99 = vcombine.high %v91, %v91
    %v100 = vcombine.high %v98, %v98
    %v109 = vpack.c.bf16 %v74, %v74
    %v110 = vpack.c.bf16 %v82, %v82
    %v111 = vpack.c.bf16 %v81, %v81
    %v112 = vpack.c.bf16 %v83, %v83
    %v113 = vpack.c.bf16 %v91, %v91
    %v114 = vpack.c.bf16 %v99, %v99
    %v115 = vpack.c.bf16 %v98, %v98
    %v116 = vpack.c.bf16 %v100, %v100
    %v117 = vld [vmem:[#allocation3] sm:$0xff]
    %v118 = vld [vmem:[#allocation3 + $0x8] sm:$0xff]
    %v119 = vld [vmem:[#allocation3 + $0x10] sm:$0xff]
    %v120 = vld [vmem:[#allocation3 + $0x18] sm:$0xff]
    %v121 = vld [vmem:[#allocation3 + $0x20] sm:$0xff]
    %v122 = vld [vmem:[#allocation3 + $0x28] sm:$0xff]
    %v123 = vld [vmem:[#allocation3 + $0x30] sm:$0xff]
    %v124 = vld [vmem:[#allocation3 + $0x38] sm:$0xff]
    %v125 = vld [vmem:[#allocation3 + $0x40] sm:$0xff]
    %v126 = vld [vmem:[#allocation3 + $0x48] sm:$0xff]
    %v127 = vld [vmem:[#allocation3 + $0x50] sm:$0xff]
    %v128 = vld [vmem:[#allocation3 + $0x58] sm:$0xff]
    %v129 = vld [vmem:[#allocation3 + $0x60] sm:$0xff]
    %v130 = vld [vmem:[#allocation3 + $0x68] sm:$0xff]
    %v131 = vld [vmem:[#allocation3 + $0x70] sm:$0xff]
    %v132 = vld [vmem:[#allocation3 + $0x78] sm:$0xff]
    %v133 = vld [vmem:[#allocation3 + $0x80] sm:$0xff]
    %v134 = vld [vmem:[#allocation3 + $0x88] sm:$0xff]
    %v135 = vld [vmem:[#allocation3 + $0x90] sm:$0xff]
    %v136 = vld [vmem:[#allocation3 + $0x98] sm:$0xff]
    %v137 = vld [vmem:[#allocation3 + $0xa0] sm:$0xff]
    %v138 = vld [vmem:[#allocation3 + $0xa8] sm:$0xff]
    %v139 = vld [vmem:[#allocation3 + $0xb0] sm:$0xff]
    %v140 = vld [vmem:[#allocation3 + $0xb8] sm:$0xff]
    %v141 = vld [vmem:[#allocation3 + $0xc0] sm:$0xff]
    %v142 = vld [vmem:[#allocation3 + $0xc8] sm:$0xff]
    %v143 = vld [vmem:[#allocation3 + $0xd0] sm:$0xff]
    %v144 = vld [vmem:[#allocation3 + $0xd8] sm:$0xff]
    %v145 = vld [vmem:[#allocation3 + $0xe0] sm:$0xff]
    %v146 = vld [vmem:[#allocation3 + $0xe8] sm:$0xff]
    %v147 = vld [vmem:[#allocation3 + $0xf0] sm:$0xff]
    %v148 = vld [vmem:[#allocation3 + $0xf8] sm:$0xff]
    %v149 = vld [vmem:[#allocation3 + $0x100] sm:$0xff]
    %v150 = vld [vmem:[#allocation3 + $0x108] sm:$0xff]
    %v151 = vld [vmem:[#allocation3 + $0x110] sm:$0xff]
    %v152 = vld [vmem:[#allocation3 + $0x118] sm:$0xff]
    %v153 = vld [vmem:[#allocation3 + $0x120] sm:$0xff]
    %v154 = vld [vmem:[#allocation3 + $0x128] sm:$0xff]
    %v155 = vld [vmem:[#allocation3 + $0x130] sm:$0xff]
    %v156 = vld [vmem:[#allocation3 + $0x138] sm:$0xff]
    %v157 = vld [vmem:[#allocation3 + $0x140] sm:$0xff]
    %v158 = vld [vmem:[#allocation3 + $0x148] sm:$0xff]
    %v159 = vld [vmem:[#allocation3 + $0x150] sm:$0xff]
    %v160 = vld [vmem:[#allocation3 + $0x158] sm:$0xff]
    %v161 = vld [vmem:[#allocation3 + $0x160] sm:$0xff]
    %v162 = vld [vmem:[#allocation3 + $0x168] sm:$0xff]
    %v163 = vld [vmem:[#allocation3 + $0x170] sm:$0xff]
    %v164 = vld [vmem:[#allocation3 + $0x178] sm:$0xff]
    %v165 = vld [vmem:[#allocation3 + $0x180] sm:$0xff]
    %v166 = vld [vmem:[#allocation3 + $0x188] sm:$0xff]
    %v167 = vld [vmem:[#allocation3 + $0x190] sm:$0xff]
    %v168 = vld [vmem:[#allocation3 + $0x198] sm:$0xff]
    %v169 = vld [vmem:[#allocation3 + $0x1a0] sm:$0xff]
    %v170 = vld [vmem:[#allocation3 + $0x1a8] sm:$0xff]
    %v171 = vld [vmem:[#allocation3 + $0x1b0] sm:$0xff]
    %v172 = vld [vmem:[#allocation3 + $0x1b8] sm:$0xff]
    %v173 = vld [vmem:[#allocation3 + $0x1c0] sm:$0xff]
    %v174 = vld [vmem:[#allocation3 + $0x1c8] sm:$0xff]
    %v175 = vld [vmem:[#allocation3 + $0x1d0] sm:$0xff]
    %v176 = vld [vmem:[#allocation3 + $0x1d8] sm:$0xff]
    %v177 = vld [vmem:[#allocation3 + $0x1e0] sm:$0xff]
    %v178 = vld [vmem:[#allocation3 + $0x1e8] sm:$0xff]
    %v179 = vld [vmem:[#allocation3 + $0x1f0] sm:$0xff]
    %v180 = vld [vmem:[#allocation3 + $0x1f8] sm:$0xff]
    %v181 = vld [vmem:[#allocation3 + $0x200] sm:$0xff]
    %v182 = vld [vmem:[#allocation3 + $0x208] sm:$0xff]
    %v183 = vld [vmem:[#allocation3 + $0x210] sm:$0xff]
    %v184 = vld [vmem:[#allocation3 + $0x218] sm:$0xff]
    %v185 = vld [vmem:[#allocation3 + $0x220] sm:$0xff]
    %v186 = vld [vmem:[#allocation3 + $0x228] sm:$0xff]
    %v187 = vld [vmem:[#allocation3 + $0x230] sm:$0xff]
    %v188 = vld [vmem:[#allocation3 + $0x238] sm:$0xff]
    %v189 = vld [vmem:[#allocation3 + $0x240] sm:$0xff]
    %v190 = vld [vmem:[#allocation3 + $0x248] sm:$0xff]
    %v191 = vld [vmem:[#allocation3 + $0x250] sm:$0xff]
    %v192 = vld [vmem:[#allocation3 + $0x258] sm:$0xff]
    %v193 = vld [vmem:[#allocation3 + $0x260] sm:$0xff]
    %v194 = vld [vmem:[#allocation3 + $0x268] sm:$0xff]
    %v195 = vld [vmem:[#allocation3 + $0x270] sm:$0xff]
    %v196 = vld [vmem:[#allocation3 + $0x278] sm:$0xff]
    %v197 = vld [vmem:[#allocation3 + $0x280] sm:$0xff]
    %v198 = vld [vmem:[#allocation3 + $0x288] sm:$0xff]
    %v199 = vld [vmem:[#allocation3 + $0x290] sm:$0xff]
    %v200 = vld [vmem:[#allocation3 + $0x298] sm:$0xff]
    %v201 = vld [vmem:[#allocation3 + $0x2a0] sm:$0xff]
    %v202 = vld [vmem:[#allocation3 + $0x2a8] sm:$0xff]
    %v203 = vld [vmem:[#allocation3 + $0x2b0] sm:$0xff]
    %v204 = vld [vmem:[#allocation3 + $0x2b8] sm:$0xff]
    %v205 = vld [vmem:[#allocation3 + $0x2c0] sm:$0xff]
    %v206 = vld [vmem:[#allocation3 + $0x2c8] sm:$0xff]
    %v207 = vld [vmem:[#allocation3 + $0x2d0] sm:$0xff]
    %v208 = vld [vmem:[#allocation3 + $0x2d8] sm:$0xff]
    %v209 = vld [vmem:[#allocation3 + $0x2e0] sm:$0xff]
    %v210 = vld [vmem:[#allocation3 + $0x2e8] sm:$0xff]
    %v211 = vld [vmem:[#allocation3 + $0x2f0] sm:$0xff]
    %v212 = vld [vmem:[#allocation3 + $0x2f8] sm:$0xff]
    %v213 = vld [vmem:[#allocation3 + $0x300] sm:$0xff]
    %v214 = vld [vmem:[#allocation3 + $0x308] sm:$0xff]
    %v215 = vld [vmem:[#allocation3 + $0x310] sm:$0xff]
    %v216 = vld [vmem:[#allocation3 + $0x318] sm:$0xff]
    %v217 = vld [vmem:[#allocation3 + $0x320] sm:$0xff]
    %v218 = vld [vmem:[#allocation3 + $0x328] sm:$0xff]
    %v219 = vld [vmem:[#allocation3 + $0x330] sm:$0xff]
    %v220 = vld [vmem:[#allocation3 + $0x338] sm:$0xff]
    %v221 = vld [vmem:[#allocation3 + $0x340] sm:$0xff]
    %v222 = vld [vmem:[#allocation3 + $0x348] sm:$0xff]
    %v223 = vld [vmem:[#allocation3 + $0x350] sm:$0xff]
    %v224 = vld [vmem:[#allocation3 + $0x358] sm:$0xff]
    %v225 = vld [vmem:[#allocation3 + $0x360] sm:$0xff]
    %v226 = vld [vmem:[#allocation3 + $0x368] sm:$0xff]
    %v227 = vld [vmem:[#allocation3 + $0x370] sm:$0xff]
    %v228 = vld [vmem:[#allocation3 + $0x378] sm:$0xff]
    %v229 = vld [vmem:[#allocation3 + $0x380] sm:$0xff]
    %v230 = vld [vmem:[#allocation3 + $0x388] sm:$0xff]
    %v231 = vld [vmem:[#allocation3 + $0x390] sm:$0xff]
    %v232 = vld [vmem:[#allocation3 + $0x398] sm:$0xff]
    %v233 = vld [vmem:[#allocation3 + $0x3a0] sm:$0xff]
    %v234 = vld [vmem:[#allocation3 + $0x3a8] sm:$0xff]
    %v235 = vld [vmem:[#allocation3 + $0x3b0] sm:$0xff]
    %v236 = vld [vmem:[#allocation3 + $0x3b8] sm:$0xff]
    %v237 = vld [vmem:[#allocation3 + $0x3c0] sm:$0xff]
    %v238 = vld [vmem:[#allocation3 + $0x3c8] sm:$0xff]
    %v239 = vld [vmem:[#allocation3 + $0x3d0] sm:$0xff]
    %v240 = vld [vmem:[#allocation3 + $0x3d8] sm:$0xff]
    %v241 = vld [vmem:[#allocation3 + $0x3e0] sm:$0xff]
    %v242 = vld [vmem:[#allocation3 + $0x3e8] sm:$0xff]
    %v243 = vld [vmem:[#allocation3 + $0x3f0] sm:$0xff]
    %v244 = vld [vmem:[#allocation3 + $0x3f8] sm:$0xff]
    %v245 = vld [vmem:[%s2] sm:$0x3]
    %v247 = vlaneseq
    %v248 = vshrl.u32 %v247, 7
    %v249 = vsub.s32 0, %v248
    %v250 = vrot.slane %v245, %v249
    %v251 = vlaneseq
    %v252 = vshrl.u32 %v251, 7
    %v253 = vsub.s32 1, %v252
    %v254 = vrot.slane %v245, %v253
    %v385 = vunpack.c.l.b16 %v117
    %v386 = vunpack.c.h.b16 %v117
    %v387 = vunpack.c.l.b16 %v118
    %v388 = vunpack.c.h.b16 %v118
    %v389 = vunpack.c.l.b16 %v119
    %v390 = vunpack.c.h.b16 %v119
    %v391 = vunpack.c.l.b16 %v120
    %v392 = vunpack.c.h.b16 %v120
    %v393 = vunpack.c.l.b16 %v121
    %v394 = vunpack.c.h.b16 %v121
    %v395 = vunpack.c.l.b16 %v122
    %v396 = vunpack.c.h.b16 %v122
    %v397 = vunpack.c.l.b16 %v123
    %v398 = vunpack.c.h.b16 %v123
    %v399 = vunpack.c.l.b16 %v124
    %v400 = vunpack.c.h.b16 %v124
    %v401 = vunpack.c.l.b16 %v125
    %v402 = vunpack.c.h.b16 %v125
    %v403 = vunpack.c.l.b16 %v126
    %v404 = vunpack.c.h.b16 %v126
    %v405 = vunpack.c.l.b16 %v127
    %v406 = vunpack.c.h.b16 %v127
    %v407 = vunpack.c.l.b16 %v128
    %v408 = vunpack.c.h.b16 %v128
    %v409 = vunpack.c.l.b16 %v129
    %v410 = vunpack.c.h.b16 %v129
    %v411 = vunpack.c.l.b16 %v130
    %v412 = vunpack.c.h.b16 %v130
    %v413 = vunpack.c.l.b16 %v131
    %v414 = vunpack.c.h.b16 %v131
    %v415 = vunpack.c.l.b16 %v132
    %v416 = vunpack.c.h.b16 %v132
    %v417 = vunpack.c.l.b16 %v133
    %v418 = vunpack.c.h.b16 %v133
    %v419 = vunpack.c.l.b16 %v134
    %v420 = vunpack.c.h.b16 %v134
    %v421 = vunpack.c.l.b16 %v135
    %v422 = vunpack.c.h.b16 %v135
    %v423 = vunpack.c.l.b16 %v136
    %v424 = vunpack.c.h.b16 %v136
    %v425 = vunpack.c.l.b16 %v137
    %v426 = vunpack.c.h.b16 %v137
    %v427 = vunpack.c.l.b16 %v138
    %v428 = vunpack.c.h.b16 %v138
    %v429 = vunpack.c.l.b16 %v139
    %v430 = vunpack.c.h.b16 %v139
    %v431 = vunpack.c.l.b16 %v140
    %v432 = vunpack.c.h.b16 %v140
    %v433 = vunpack.c.l.b16 %v141
    %v434 = vunpack.c.h.b16 %v141
    %v435 = vunpack.c.l.b16 %v142
    %v436 = vunpack.c.h.b16 %v142
    %v437 = vunpack.c.l.b16 %v143
    %v438 = vunpack.c.h.b16 %v143
    %v439 = vunpack.c.l.b16 %v144
    %v440 = vunpack.c.h.b16 %v144
    %v441 = vunpack.c.l.b16 %v145
    %v442 = vunpack.c.h.b16 %v145
    %v443 = vunpack.c.l.b16 %v146
    %v444 = vunpack.c.h.b16 %v146
    %v445 = vunpack.c.l.b16 %v147
    %v446 = vunpack.c.h.b16 %v147
    %v447 = vunpack.c.l.b16 %v148
    %v448 = vunpack.c.h.b16 %v148
    %v449 = vunpack.c.l.b16 %v149
    %v450 = vunpack.c.h.b16 %v149
    %v451 = vunpack.c.l.b16 %v150
    %v452 = vunpack.c.h.b16 %v150
    %v453 = vunpack.c.l.b16 %v151
    %v454 = vunpack.c.h.b16 %v151
    %v455 = vunpack.c.l.b16 %v152
    %v456 = vunpack.c.h.b16 %v152
    %v457 = vunpack.c.l.b16 %v153
    %v458 = vunpack.c.h.b16 %v153
    %v459 = vunpack.c.l.b16 %v154
    %v460 = vunpack.c.h.b16 %v154
    %v461 = vunpack.c.l.b16 %v155
    %v462 = vunpack.c.h.b16 %v155
    %v463 = vunpack.c.l.b16 %v156
    %v464 = vunpack.c.h.b16 %v156
    %v465 = vunpack.c.l.b16 %v157
    %v466 = vunpack.c.h.b16 %v157
    %v467 = vunpack.c.l.b16 %v158
    %v468 = vunpack.c.h.b16 %v158
    %v469 = vunpack.c.l.b16 %v159
    %v470 = vunpack.c.h.b16 %v159
    %v471 = vunpack.c.l.b16 %v160
    %v472 = vunpack.c.h.b16 %v160
    %v473 = vunpack.c.l.b16 %v161
    %v474 = vunpack.c.h.b16 %v161
    %v475 = vunpack.c.l.b16 %v162
    %v476 = vunpack.c.h.b16 %v162
    %v477 = vunpack.c.l.b16 %v163
    %v478 = vunpack.c.h.b16 %v163
    %v479 = vunpack.c.l.b16 %v164
    %v480 = vunpack.c.h.b16 %v164
    %v481 = vunpack.c.l.b16 %v165
    %v482 = vunpack.c.h.b16 %v165
    %v483 = vunpack.c.l.b16 %v166
    %v484 = vunpack.c.h.b16 %v166
    %v485 = vunpack.c.l.b16 %v167
    %v486 = vunpack.c.h.b16 %v167
    %v487 = vunpack.c.l.b16 %v168
    %v488 = vunpack.c.h.b16 %v168
    %v489 = vunpack.c.l.b16 %v169
    %v490 = vunpack.c.h.b16 %v169
    %v491 = vunpack.c.l.b16 %v170
    %v492 = vunpack.c.h.b16 %v170
    %v493 = vunpack.c.l.b16 %v171
    %v494 = vunpack.c.h.b16 %v171
    %v495 = vunpack.c.l.b16 %v172
    %v496 = vunpack.c.h.b16 %v172
    %v497 = vunpack.c.l.b16 %v173
    %v498 = vunpack.c.h.b16 %v173
    %v499 = vunpack.c.l.b16 %v174
    %v500 = vunpack.c.h.b16 %v174
    %v501 = vunpack.c.l.b16 %v175
    %v502 = vunpack.c.h.b16 %v175
    %v503 = vunpack.c.l.b16 %v176
    %v504 = vunpack.c.h.b16 %v176
    %v505 = vunpack.c.l.b16 %v177
    %v506 = vunpack.c.h.b16 %v177
    %v507 = vunpack.c.l.b16 %v178
    %v508 = vunpack.c.h.b16 %v178
    %v509 = vunpack.c.l.b16 %v179
    %v510 = vunpack.c.h.b16 %v179
    %v511 = vunpack.c.l.b16 %v180
    %v512 = vunpack.c.h.b16 %v180
    %v513 = vunpack.c.l.b16 %v181
    %v514 = vunpack.c.h.b16 %v181
    %v515 = vunpack.c.l.b16 %v182
    %v516 = vunpack.c.h.b16 %v182
    %v517 = vunpack.c.l.b16 %v183
    %v518 = vunpack.c.h.b16 %v183
    %v519 = vunpack.c.l.b16 %v184
    %v520 = vunpack.c.h.b16 %v184
    %v521 = vunpack.c.l.b16 %v185
    %v522 = vunpack.c.h.b16 %v185
    %v523 = vunpack.c.l.b16 %v186
    %v524 = vunpack.c.h.b16 %v186
    %v525 = vunpack.c.l.b16 %v187
    %v526 = vunpack.c.h.b16 %v187
    %v527 = vunpack.c.l.b16 %v188
    %v528 = vunpack.c.h.b16 %v188
    %v529 = vunpack.c.l.b16 %v189
    %v530 = vunpack.c.h.b16 %v189
    %v531 = vunpack.c.l.b16 %v190
    %v532 = vunpack.c.h.b16 %v190
    %v533 = vunpack.c.l.b16 %v191
    %v534 = vunpack.c.h.b16 %v191
    %v535 = vunpack.c.l.b16 %v192
    %v536 = vunpack.c.h.b16 %v192
    %v537 = vunpack.c.l.b16 %v193
    %v538 = vunpack.c.h.b16 %v193
    %v539 = vunpack.c.l.b16 %v194
    %v540 = vunpack.c.h.b16 %v194
    %v541 = vunpack.c.l.b16 %v195
    %v542 = vunpack.c.h.b16 %v195
    %v543 = vunpack.c.l.b16 %v196
    %v544 = vunpack.c.h.b16 %v196
    %v545 = vunpack.c.l.b16 %v197
    %v546 = vunpack.c.h.b16 %v197
    %v547 = vunpack.c.l.b16 %v198
    %v548 = vunpack.c.h.b16 %v198
    %v549 = vunpack.c.l.b16 %v199
    %v550 = vunpack.c.h.b16 %v199
    %v551 = vunpack.c.l.b16 %v200
    %v552 = vunpack.c.h.b16 %v200
    %v553 = vunpack.c.l.b16 %v201
    %v554 = vunpack.c.h.b16 %v201
    %v555 = vunpack.c.l.b16 %v202
    %v556 = vunpack.c.h.b16 %v202
    %v557 = vunpack.c.l.b16 %v203
    %v558 = vunpack.c.h.b16 %v203
    %v559 = vunpack.c.l.b16 %v204
    %v560 = vunpack.c.h.b16 %v204
    %v561 = vunpack.c.l.b16 %v205
    %v562 = vunpack.c.h.b16 %v205
    %v563 = vunpack.c.l.b16 %v206
    %v564 = vunpack.c.h.b16 %v206
    %v565 = vunpack.c.l.b16 %v207
    %v566 = vunpack.c.h.b16 %v207
    %v567 = vunpack.c.l.b16 %v208
    %v568 = vunpack.c.h.b16 %v208
    %v569 = vunpack.c.l.b16 %v209
    %v570 = vunpack.c.h.b16 %v209
    %v571 = vunpack.c.l.b16 %v210
    %v572 = vunpack.c.h.b16 %v210
    %v573 = vunpack.c.l.b16 %v211
    %v574 = vunpack.c.h.b16 %v211
    %v575 = vunpack.c.l.b16 %v212
    %v576 = vunpack.c.h.b16 %v212
    %v577 = vunpack.c.l.b16 %v213
    %v578 = vunpack.c.h.b16 %v213
    %v579 = vunpack.c.l.b16 %v214
    %v580 = vunpack.c.h.b16 %v214
    %v581 = vunpack.c.l.b16 %v215
    %v582 = vunpack.c.h.b16 %v215
    %v583 = vunpack.c.l.b16 %v216
    %v584 = vunpack.c.h.b16 %v216
    %v585 = vunpack.c.l.b16 %v217
    %v586 = vunpack.c.h.b16 %v217
    %v587 = vunpack.c.l.b16 %v218
    %v588 = vunpack.c.h.b16 %v218
    %v589 = vunpack.c.l.b16 %v219
    %v590 = vunpack.c.h.b16 %v219
    %v591 = vunpack.c.l.b16 %v220
    %v592 = vunpack.c.h.b16 %v220
    %v593 = vunpack.c.l.b16 %v221
    %v594 = vunpack.c.h.b16 %v221
    %v595 = vunpack.c.l.b16 %v222
    %v596 = vunpack.c.h.b16 %v222
    %v597 = vunpack.c.l.b16 %v223
    %v598 = vunpack.c.h.b16 %v223
    %v599 = vunpack.c.l.b16 %v224
    %v600 = vunpack.c.h.b16 %v224
    %v601 = vunpack.c.l.b16 %v225
    %v602 = vunpack.c.h.b16 %v225
    %v603 = vunpack.c.l.b16 %v226
    %v604 = vunpack.c.h.b16 %v226
    %v605 = vunpack.c.l.b16 %v227
    %v606 = vunpack.c.h.b16 %v227
    %v607 = vunpack.c.l.b16 %v228
    %v608 = vunpack.c.h.b16 %v228
    %v609 = vunpack.c.l.b16 %v229
    %v610 = vunpack.c.h.b16 %v229
    %v611 = vunpack.c.l.b16 %v230
    %v612 = vunpack.c.h.b16 %v230
    %v613 = vunpack.c.l.b16 %v231
    %v614 = vunpack.c.h.b16 %v231
    %v615 = vunpack.c.l.b16 %v232
    %v616 = vunpack.c.h.b16 %v232
    %v617 = vunpack.c.l.b16 %v233
    %v618 = vunpack.c.h.b16 %v233
    %v619 = vunpack.c.l.b16 %v234
    %v620 = vunpack.c.h.b16 %v234
    %v621 = vunpack.c.l.b16 %v235
    %v622 = vunpack.c.h.b16 %v235
    %v623 = vunpack.c.l.b16 %v236
    %v624 = vunpack.c.h.b16 %v236
    %v625 = vunpack.c.l.b16 %v237
    %v626 = vunpack.c.h.b16 %v237
    %v627 = vunpack.c.l.b16 %v238
    %v628 = vunpack.c.h.b16 %v238
    %v629 = vunpack.c.l.b16 %v239
    %v630 = vunpack.c.h.b16 %v239
    %v631 = vunpack.c.l.b16 %v240
    %v632 = vunpack.c.h.b16 %v240
    %v633 = vunpack.c.l.b16 %v241
    %v634 = vunpack.c.h.b16 %v241
    %v635 = vunpack.c.l.b16 %v242
    %v636 = vunpack.c.h.b16 %v242
    %v637 = vunpack.c.l.b16 %v243
    %v638 = vunpack.c.h.b16 %v243
    %v639 = vunpack.c.l.b16 %v244
    %v640 = vunpack.c.h.b16 %v244
    %v641 = vpack.c.b16 %v387, %v385
    %v642 = vpack.c.b16 %v388, %v386
    %v643 = vpack.c.b16 %v391, %v389
    %v644 = vpack.c.b16 %v392, %v390
    %v645 = vpack.c.b16 %v395, %v393
    %v646 = vpack.c.b16 %v396, %v394
    %v647 = vpack.c.b16 %v399, %v397
    %v648 = vpack.c.b16 %v400, %v398
    %v649 = vpack.c.b16 %v403, %v401
    %v650 = vpack.c.b16 %v404, %v402
    %v651 = vpack.c.b16 %v407, %v405
    %v652 = vpack.c.b16 %v408, %v406
    %v653 = vpack.c.b16 %v411, %v409
    %v654 = vpack.c.b16 %v412, %v410
    %v655 = vpack.c.b16 %v415, %v413
    %v656 = vpack.c.b16 %v416, %v414
    %v657 = vpack.c.b16 %v419, %v417
    %v658 = vpack.c.b16 %v420, %v418
    %v659 = vpack.c.b16 %v423, %v421
    %v660 = vpack.c.b16 %v424, %v422
    %v661 = vpack.c.b16 %v427, %v425
    %v662 = vpack.c.b16 %v428, %v426
    %v663 = vpack.c.b16 %v431, %v429
    %v664 = vpack.c.b16 %v432, %v430
    %v665 = vpack.c.b16 %v435, %v433
    %v666 = vpack.c.b16 %v436, %v434
    %v667 = vpack.c.b16 %v439, %v437
    %v668 = vpack.c.b16 %v440, %v438
    %v669 = vpack.c.b16 %v443, %v441
    %v670 = vpack.c.b16 %v444, %v442
    %v671 = vpack.c.b16 %v447, %v445
    %v672 = vpack.c.b16 %v448, %v446
    %v673 = vpack.c.b16 %v451, %v449
    %v674 = vpack.c.b16 %v452, %v450
    %v675 = vpack.c.b16 %v455, %v453
    %v676 = vpack.c.b16 %v456, %v454
    %v677 = vpack.c.b16 %v459, %v457
    %v678 = vpack.c.b16 %v460, %v458
    %v679 = vpack.c.b16 %v463, %v461
    %v680 = vpack.c.b16 %v464, %v462
    %v681 = vpack.c.b16 %v467, %v465
    %v682 = vpack.c.b16 %v468, %v466
    %v683 = vpack.c.b16 %v471, %v469
    %v684 = vpack.c.b16 %v472, %v470
    %v685 = vpack.c.b16 %v475, %v473
    %v686 = vpack.c.b16 %v476, %v474
    %v687 = vpack.c.b16 %v479, %v477
    %v688 = vpack.c.b16 %v480, %v478
    %v689 = vpack.c.b16 %v483, %v481
    %v690 = vpack.c.b16 %v484, %v482
    %v691 = vpack.c.b16 %v487, %v485
    %v692 = vpack.c.b16 %v488, %v486
    %v693 = vpack.c.b16 %v491, %v489
    %v694 = vpack.c.b16 %v492, %v490
    %v695 = vpack.c.b16 %v495, %v493
    %v696 = vpack.c.b16 %v496, %v494
    %v697 = vpack.c.b16 %v499, %v497
    %v698 = vpack.c.b16 %v500, %v498
    %v699 = vpack.c.b16 %v503, %v501
    %v700 = vpack.c.b16 %v504, %v502
    %v701 = vpack.c.b16 %v507, %v505
    %v702 = vpack.c.b16 %v508, %v506
    %v703 = vpack.c.b16 %v511, %v509
    %v704 = vpack.c.b16 %v512, %v510
    %v705 = vpack.c.b16 %v515, %v513
    %v706 = vpack.c.b16 %v516, %v514
    %v707 = vpack.c.b16 %v519, %v517
    %v708 = vpack.c.b16 %v520, %v518
    %v709 = vpack.c.b16 %v523, %v521
    %v710 = vpack.c.b16 %v524, %v522
    %v711 = vpack.c.b16 %v527, %v525
    %v712 = vpack.c.b16 %v528, %v526
    %v713 = vpack.c.b16 %v531, %v529
    %v714 = vpack.c.b16 %v532, %v530
    %v715 = vpack.c.b16 %v535, %v533
    %v716 = vpack.c.b16 %v536, %v534
    %v717 = vpack.c.b16 %v539, %v537
    %v718 = vpack.c.b16 %v540, %v538
    %v719 = vpack.c.b16 %v543, %v541
    %v720 = vpack.c.b16 %v544, %v542
    %v721 = vpack.c.b16 %v547, %v545
    %v722 = vpack.c.b16 %v548, %v546
    %v723 = vpack.c.b16 %v551, %v549
    %v724 = vpack.c.b16 %v552, %v550
    %v725 = vpack.c.b16 %v555, %v553
    %v726 = vpack.c.b16 %v556, %v554
    %v727 = vpack.c.b16 %v559, %v557
    %v728 = vpack.c.b16 %v560, %v558
    %v729 = vpack.c.b16 %v563, %v561
    %v730 = vpack.c.b16 %v564, %v562
    %v731 = vpack.c.b16 %v567, %v565
    %v732 = vpack.c.b16 %v568, %v566
    %v733 = vpack.c.b16 %v571, %v569
    %v734 = vpack.c.b16 %v572, %v570
    %v735 = vpack.c.b16 %v575, %v573
    %v736 = vpack.c.b16 %v576, %v574
    %v737 = vpack.c.b16 %v579, %v577
    %v738 = vpack.c.b16 %v580, %v578
    %v739 = vpack.c.b16 %v583, %v581
    %v740 = vpack.c.b16 %v584, %v582
    %v741 = vpack.c.b16 %v587, %v585
    %v742 = vpack.c.b16 %v588, %v586
    %v743 = vpack.c.b16 %v591, %v589
    %v744 = vpack.c.b16 %v592, %v590
    %v745 = vpack.c.b16 %v595, %v593
    %v746 = vpack.c.b16 %v596, %v594
    %v747 = vpack.c.b16 %v599, %v597
    %v748 = vpack.c.b16 %v600, %v598
    %v749 = vpack.c.b16 %v603, %v601
    %v750 = vpack.c.b16 %v604, %v602
    %v751 = vpack.c.b16 %v607, %v605
    %v752 = vpack.c.b16 %v608, %v606
    %v753 = vpack.c.b16 %v611, %v609
    %v754 = vpack.c.b16 %v612, %v610
    %v755 = vpack.c.b16 %v615, %v613
    %v756 = vpack.c.b16 %v616, %v614
    %v757 = vpack.c.b16 %v619, %v617
    %v758 = vpack.c.b16 %v620, %v618
    %v759 = vpack.c.b16 %v623, %v621
    %v760 = vpack.c.b16 %v624, %v622
    %v761 = vpack.c.b16 %v627, %v625
    %v762 = vpack.c.b16 %v628, %v626
    %v763 = vpack.c.b16 %v631, %v629
    %v764 = vpack.c.b16 %v632, %v630
    %v765 = vpack.c.b16 %v635, %v633
    %v766 = vpack.c.b16 %v636, %v634
    %v767 = vpack.c.b16 %v639, %v637
    %v768 = vpack.c.b16 %v640, %v638
    %897 = vmatprep.subr.bf16.mxu0 %v642
    %898 = vmatpush1.bf16.msra.mxu0 %v641
    %899 = vmatprep.subr.bf16.mxu0 %v644
    %900 = vmatpush1.bf16.msra.mxu0 %v643
    %901 = vmatprep.subr.bf16.mxu0 %v646
    %902 = vmatpush1.bf16.msra.mxu0 %v645
    %903 = vmatprep.subr.bf16.mxu0 %v648
    %904 = vmatpush1.bf16.msra.mxu0 %v647
    %905 = vmatprep.subr.bf16.mxu0 %v650
    %906 = vmatpush1.bf16.msra.mxu0 %v649
    %907 = vmatprep.subr.bf16.mxu0 %v652
    %908 = vmatpush1.bf16.msra.mxu0 %v651
    %909 = vmatprep.subr.bf16.mxu0 %v654
    %910 = vmatpush1.bf16.msra.mxu0 %v653
    %911 = vmatprep.subr.bf16.mxu0 %v656
    %912 = vmatpush1.bf16.msra.mxu0 %v655
    %913 = vmatprep.subr.bf16.mxu0 %v658
    %914 = vmatpush1.bf16.msra.mxu0 %v657
    %915 = vmatprep.subr.bf16.mxu0 %v660
    %916 = vmatpush1.bf16.msra.mxu0 %v659
    %917 = vmatprep.subr.bf16.mxu0 %v662
    %918 = vmatpush1.bf16.msra.mxu0 %v661
    %919 = vmatprep.subr.bf16.mxu0 %v664
    %920 = vmatpush1.bf16.msra.mxu0 %v663
    %921 = vmatprep.subr.bf16.mxu0 %v666
    %922 = vmatpush1.bf16.msra.mxu0 %v665
    %923 = vmatprep.subr.bf16.mxu0 %v668
    %924 = vmatpush1.bf16.msra.mxu0 %v667
    %925 = vmatprep.subr.bf16.mxu0 %v670
    %926 = vmatpush1.bf16.msra.mxu0 %v669
    %927 = vmatprep.subr.bf16.mxu0 %v672
    %928 = vmatpush1.bf16.msra.mxu0 %v671
    %929 = vmatprep.mubr.bf16.mxu0 %v110
    %930 = vmatmul.mubr.bf16.gmra.mrb[0].mxu0 %v109
    %v931 = vpop.f32.mrb[0].mxu0
    %v932 = vadd.f32 %v250, %v931
    %v933 = vpop.f32.mrb[0].mxu0
    %v934 = vadd.f32 %v254, %v933
    %v935 = vpop.f32.mrb[0].mxu0
    %v936 = vpop.f32.mrb[0].mxu0
    %937 = vdwg.mxu0
    %938 = vmatprep.subr.bf16.mxu0 %v674
    %939 = vmatpush1.bf16.msra.mxu0 %v673
    %940 = vmatprep.subr.bf16.mxu0 %v676
    %941 = vmatpush1.bf16.msra.mxu0 %v675
    %942 = vmatprep.subr.bf16.mxu0 %v678
    %943 = vmatpush1.bf16.msra.mxu0 %v677
    %944 = vmatprep.subr.bf16.mxu0 %v680
    %945 = vmatpush1.bf16.msra.mxu0 %v679
    %946 = vmatprep.subr.bf16.mxu0 %v682
    %947 = vmatpush1.bf16.msra.mxu0 %v681
    %948 = vmatprep.subr.bf16.mxu0 %v684
    %949 = vmatpush1.bf16.msra.mxu0 %v683
    %950 = vmatprep.subr.bf16.mxu0 %v686
    %951 = vmatpush1.bf16.msra.mxu0 %v685
    %952 = vmatprep.subr.bf16.mxu0 %v688
    %953 = vmatpush1.bf16.msra.mxu0 %v687
    %954 = vmatprep.subr.bf16.mxu0 %v690
    %955 = vmatpush1.bf16.msra.mxu0 %v689
    %956 = vmatprep.subr.bf16.mxu0 %v692
    %957 = vmatpush1.bf16.msra.mxu0 %v691
    %958 = vmatprep.subr.bf16.mxu0 %v694
    %959 = vmatpush1.bf16.msra.mxu0 %v693
    %960 = vmatprep.subr.bf16.mxu0 %v696
    %961 = vmatpush1.bf16.msra.mxu0 %v695
    %962 = vmatprep.subr.bf16.mxu0 %v698
    %963 = vmatpush1.bf16.msra.mxu0 %v697
    %964 = vmatprep.subr.bf16.mxu0 %v700
    %965 = vmatpush1.bf16.msra.mxu0 %v699
    %966 = vmatprep.subr.bf16.mxu0 %v702
    %967 = vmatpush1.bf16.msra.mxu0 %v701
    %968 = vmatprep.subr.bf16.mxu0 %v704
    %969 = vmatpush1.bf16.msra.mxu0 %v703
    %970 = vmatprep.mubr.bf16.mxu0 %v112
    %971 = vmatmul.mubr.bf16.gmra.mrb[0].mxu0 %v111
    %v972 = vpop.f32.mrb[0].mxu0
    %v973 = vadd.f32 %v932, %v972
    %v974 = vpop.f32.mrb[0].mxu0
    %v975 = vadd.f32 %v934, %v974
    %v976 = vpop.f32.mrb[0].mxu0
    %v977 = vpop.f32.mrb[0].mxu0
    %978 = vdwg.mxu0
    %979 = vmatprep.subr.bf16.mxu0 %v706
    %980 = vmatpush1.bf16.msra.mxu0 %v705
    %981 = vmatprep.subr.bf16.mxu0 %v708
    %982 = vmatpush1.bf16.msra.mxu0 %v707
    %983 = vmatprep.subr.bf16.mxu0 %v710
    %984 = vmatpush1.bf16.msra.mxu0 %v709
    %985 = vmatprep.subr.bf16.mxu0 %v712
    %986 = vmatpush1.bf16.msra.mxu0 %v711
    %987 = vmatprep.subr.bf16.mxu0 %v714
    %988 = vmatpush1.bf16.msra.mxu0 %v713
    %989 = vmatprep.subr.bf16.mxu0 %v716
    %990 = vmatpush1.bf16.msra.mxu0 %v715
    %991 = vmatprep.subr.bf16.mxu0 %v718
    %992 = vmatpush1.bf16.msra.mxu0 %v717
    %993 = vmatprep.subr.bf16.mxu0 %v720
    %994 = vmatpush1.bf16.msra.mxu0 %v719
    %995 = vmatprep.subr.bf16.mxu0 %v722
    %996 = vmatpush1.bf16.msra.mxu0 %v721
    %997 = vmatprep.subr.bf16.mxu0 %v724
    %998 = vmatpush1.bf16.msra.mxu0 %v723
    %999 = vmatprep.subr.bf16.mxu0 %v726
    %1000 = vmatpush1.bf16.msra.mxu0 %v725
    %1001 = vmatprep.subr.bf16.mxu0 %v728
    %1002 = vmatpush1.bf16.msra.mxu0 %v727
    %1003 = vmatprep.subr.bf16.mxu0 %v730
    %1004 = vmatpush1.bf16.msra.mxu0 %v729
    %1005 = vmatprep.subr.bf16.mxu0 %v732
    %1006 = vmatpush1.bf16.msra.mxu0 %v731
    %1007 = vmatprep.subr.bf16.mxu0 %v734
    %1008 = vmatpush1.bf16.msra.mxu0 %v733
    %1009 = vmatprep.subr.bf16.mxu0 %v736
    %1010 = vmatpush1.bf16.msra.mxu0 %v735
    %1011 = vmatprep.mubr.bf16.mxu0 %v114
    %1012 = vmatmul.mubr.bf16.gmra.mrb[0].mxu0 %v113
    %v1013 = vpop.f32.mrb[0].mxu0
    %v1014 = vadd.f32 %v973, %v1013
    %v1015 = vpop.f32.mrb[0].mxu0
    %v1016 = vadd.f32 %v975, %v1015
    %v1017 = vpop.f32.mrb[0].mxu0
    %v1018 = vpop.f32.mrb[0].mxu0
    %1019 = vdwg.mxu0
    %1020 = vmatprep.subr.bf16.mxu0 %v738
    %1021 = vmatpush1.bf16.msra.mxu0 %v737
    %1022 = vmatprep.subr.bf16.mxu0 %v740
    %1023 = vmatpush1.bf16.msra.mxu0 %v739
    %1024 = vmatprep.subr.bf16.mxu0 %v742
    %1025 = vmatpush1.bf16.msra.mxu0 %v741
    %1026 = vmatprep.subr.bf16.mxu0 %v744
    %1027 = vmatpush1.bf16.msra.mxu0 %v743
    %1028 = vmatprep.subr.bf16.mxu0 %v746
    %1029 = vmatpush1.bf16.msra.mxu0 %v745
    %1030 = vmatprep.subr.bf16.mxu0 %v748
    %1031 = vmatpush1.bf16.msra.mxu0 %v747
    %1032 = vmatprep.subr.bf16.mxu0 %v750
    %1033 = vmatpush1.bf16.msra.mxu0 %v749
    %1034 = vmatprep.subr.bf16.mxu0 %v752
    %1035 = vmatpush1.bf16.msra.mxu0 %v751
    %1036 = vmatprep.subr.bf16.mxu0 %v754
    %1037 = vmatpush1.bf16.msra.mxu0 %v753
    %1038 = vmatprep.subr.bf16.mxu0 %v756
    %1039 = vmatpush1.bf16.msra.mxu0 %v755
    %1040 = vmatprep.subr.bf16.mxu0 %v758
    %1041 = vmatpush1.bf16.msra.mxu0 %v757
    %1042 = vmatprep.subr.bf16.mxu0 %v760
    %1043 = vmatpush1.bf16.msra.mxu0 %v759
    %1044 = vmatprep.subr.bf16.mxu0 %v762
    %1045 = vmatpush1.bf16.msra.mxu0 %v761
    %1046 = vmatprep.subr.bf16.mxu0 %v764
    %1047 = vmatpush1.bf16.msra.mxu0 %v763
    %1048 = vmatprep.subr.bf16.mxu0 %v766
    %1049 = vmatpush1.bf16.msra.mxu0 %v765
    %1050 = vmatprep.subr.bf16.mxu0 %v768
    %1051 = vmatpush1.bf16.msra.mxu0 %v767
    %1052 = vmatprep.mubr.bf16.mxu0 %v116
    %1053 = vmatmul.mubr.bf16.gmra.mrb[0].mxu0 %v115
    %v1054 = vpop.f32.mrb[0].mxu0
    %v1055 = vadd.f32 %v1014, %v1054
    %v1056 = vpop.f32.mrb[0].mxu0
    %v1057 = vadd.f32 %v1016, %v1056
    %v1058 = vpop.f32.mrb[0].mxu0
    %v1059 = vpop.f32.mrb[0].mxu0
    %1060 = vdwg.mxu0
    %v1061 = vmax.f32 %v1055, 0.0
    %v1062 = vmax.f32 %v1057, 0.0
    %v1063 = vpack.c.bf16 %v1061, %v1061
    %v1064 = vpack.c.bf16 %v1062, %v1062
    %v1065 = vld [vmem:[#allocation5] sm:$0xff]
    %v1066 = vld [vmem:[#allocation5 + $0x8] sm:$0xff]
    %v1067 = vld [vmem:[#allocation5 + $0x10] sm:$0xff]
    %v1068 = vld [vmem:[#allocation5 + $0x18] sm:$0xff]
    %v1069 = vld [vmem:[#allocation5 + $0x20] sm:$0xff]
    %v1070 = vld [vmem:[#allocation5 + $0x28] sm:$0xff]
    %v1071 = vld [vmem:[#allocation5 + $0x30] sm:$0xff]
    %v1072 = vld [vmem:[#allocation5 + $0x38] sm:$0xff]
    %v1073 = vld [vmem:[#allocation5 + $0x40] sm:$0xff]
    %v1074 = vld [vmem:[#allocation5 + $0x48] sm:$0xff]
    %v1075 = vld [vmem:[#allocation5 + $0x50] sm:$0xff]
    %v1076 = vld [vmem:[#allocation5 + $0x58] sm:$0xff]
    %v1077 = vld [vmem:[#allocation5 + $0x60] sm:$0xff]
    %v1078 = vld [vmem:[#allocation5 + $0x68] sm:$0xff]
    %v1079 = vld [vmem:[#allocation5 + $0x70] sm:$0xff]
    %v1080 = vld [vmem:[#allocation5 + $0x78] sm:$0xff]
    %v1081 = vld [vmem:[#allocation5 + $0x80] sm:$0xff]
    %v1082 = vld [vmem:[#allocation5 + $0x88] sm:$0xff]
    %v1083 = vld [vmem:[#allocation5 + $0x90] sm:$0xff]
    %v1084 = vld [vmem:[#allocation5 + $0x98] sm:$0xff]
    %v1085 = vld [vmem:[#allocation5 + $0xa0] sm:$0xff]
    %v1086 = vld [vmem:[#allocation5 + $0xa8] sm:$0xff]
    %v1087 = vld [vmem:[#allocation5 + $0xb0] sm:$0xff]
    %v1088 = vld [vmem:[#allocation5 + $0xb8] sm:$0xff]
    %v1089 = vld [vmem:[#allocation5 + $0xc0] sm:$0xff]
    %v1090 = vld [vmem:[#allocation5 + $0xc8] sm:$0xff]
    %v1091 = vld [vmem:[#allocation5 + $0xd0] sm:$0xff]
    %v1092 = vld [vmem:[#allocation5 + $0xd8] sm:$0xff]
    %v1093 = vld [vmem:[#allocation5 + $0xe0] sm:$0xff]
    %v1094 = vld [vmem:[#allocation5 + $0xe8] sm:$0xff]
    %v1095 = vld [vmem:[#allocation5 + $0xf0] sm:$0xff]
    %v1096 = vld [vmem:[#allocation5 + $0xf8] sm:$0xff]
    %v1097 = vld [vmem:[%s4] sm:$0x3]
    %v1099 = vlaneseq
    %v1100 = vshrl.u32 %v1099, 7
    %v1101 = vsub.s32 0, %v1100
    %v1102 = vrot.slane %v1097, %v1101
    %v1103 = vlaneseq
    %v1104 = vshrl.u32 %v1103, 7
    %v1105 = vsub.s32 1, %v1104
    %v1106 = vrot.slane %v1097, %v1105
    %v1141 = vunpack.c.l.b16 %v1065
    %v1142 = vunpack.c.h.b16 %v1065
    %v1143 = vunpack.c.l.b16 %v1066
    %v1144 = vunpack.c.h.b16 %v1066
    %v1145 = vunpack.c.l.b16 %v1067
    %v1146 = vunpack.c.h.b16 %v1067
    %v1147 = vunpack.c.l.b16 %v1068
    %v1148 = vunpack.c.h.b16 %v1068
    %v1149 = vunpack.c.l.b16 %v1069
    %v1150 = vunpack.c.h.b16 %v1069
    %v1151 = vunpack.c.l.b16 %v1070
    %v1152 = vunpack.c.h.b16 %v1070
    %v1153 = vunpack.c.l.b16 %v1071
    %v1154 = vunpack.c.h.b16 %v1071
    %v1155 = vunpack.c.l.b16 %v1072
    %v1156 = vunpack.c.h.b16 %v1072
    %v1157 = vunpack.c.l.b16 %v1073
    %v1158 = vunpack.c.h.b16 %v1073
    %v1159 = vunpack.c.l.b16 %v1074
    %v1160 = vunpack.c.h.b16 %v1074
    %v1161 = vunpack.c.l.b16 %v1075
    %v1162 = vunpack.c.h.b16 %v1075
    %v1163 = vunpack.c.l.b16 %v1076
    %v1164 = vunpack.c.h.b16 %v1076
    %v1165 = vunpack.c.l.b16 %v1077
    %v1166 = vunpack.c.h.b16 %v1077
    %v1167 = vunpack.c.l.b16 %v1078
    %v1168 = vunpack.c.h.b16 %v1078
    %v1169 = vunpack.c.l.b16 %v1079
    %v1170 = vunpack.c.h.b16 %v1079
    %v1171 = vunpack.c.l.b16 %v1080
    %v1172 = vunpack.c.h.b16 %v1080
    %v1173 = vunpack.c.l.b16 %v1081
    %v1174 = vunpack.c.h.b16 %v1081
    %v1175 = vunpack.c.l.b16 %v1082
    %v1176 = vunpack.c.h.b16 %v1082
    %v1177 = vunpack.c.l.b16 %v1083
    %v1178 = vunpack.c.h.b16 %v1083
    %v1179 = vunpack.c.l.b16 %v1084
    %v1180 = vunpack.c.h.b16 %v1084
    %v1181 = vunpack.c.l.b16 %v1085
    %v1182 = vunpack.c.h.b16 %v1085
    %v1183 = vunpack.c.l.b16 %v1086
    %v1184 = vunpack.c.h.b16 %v1086
    %v1185 = vunpack.c.l.b16 %v1087
    %v1186 = vunpack.c.h.b16 %v1087
    %v1187 = vunpack.c.l.b16 %v1088
    %v1188 = vunpack.c.h.b16 %v1088
    %v1189 = vunpack.c.l.b16 %v1089
    %v1190 = vunpack.c.h.b16 %v1089
    %v1191 = vunpack.c.l.b16 %v1090
    %v1192 = vunpack.c.h.b16 %v1090
    %v1193 = vunpack.c.l.b16 %v1091
    %v1194 = vunpack.c.h.b16 %v1091
    %v1195 = vunpack.c.l.b16 %v1092
    %v1196 = vunpack.c.h.b16 %v1092
    %v1197 = vunpack.c.l.b16 %v1093
    %v1198 = vunpack.c.h.b16 %v1093
    %v1199 = vunpack.c.l.b16 %v1094
    %v1200 = vunpack.c.h.b16 %v1094
    %v1201 = vunpack.c.l.b16 %v1095
    %v1202 = vunpack.c.h.b16 %v1095
    %v1203 = vunpack.c.l.b16 %v1096
    %v1204 = vunpack.c.h.b16 %v1096
    %v1205 = vpack.c.b16 %v1143, %v1141
    %v1206 = vpack.c.b16 %v1144, %v1142
    %v1207 = vpack.c.b16 %v1147, %v1145
    %v1208 = vpack.c.b16 %v1148, %v1146
    %v1209 = vpack.c.b16 %v1151, %v1149
    %v1210 = vpack.c.b16 %v1152, %v1150
    %v1211 = vpack.c.b16 %v1155, %v1153
    %v1212 = vpack.c.b16 %v1156, %v1154
    %v1213 = vpack.c.b16 %v1159, %v1157
    %v1214 = vpack.c.b16 %v1160, %v1158
    %v1215 = vpack.c.b16 %v1163, %v1161
    %v1216 = vpack.c.b16 %v1164, %v1162
    %v1217 = vpack.c.b16 %v1167, %v1165
    %v1218 = vpack.c.b16 %v1168, %v1166
    %v1219 = vpack.c.b16 %v1171, %v1169
    %v1220 = vpack.c.b16 %v1172, %v1170
    %v1221 = vpack.c.b16 %v1175, %v1173
    %v1222 = vpack.c.b16 %v1176, %v1174
    %v1223 = vpack.c.b16 %v1179, %v1177
    %v1224 = vpack.c.b16 %v1180, %v1178
    %v1225 = vpack.c.b16 %v1183, %v1181
    %v1226 = vpack.c.b16 %v1184, %v1182
    %v1227 = vpack.c.b16 %v1187, %v1185
    %v1228 = vpack.c.b16 %v1188, %v1186
    %v1229 = vpack.c.b16 %v1191, %v1189
    %v1230 = vpack.c.b16 %v1192, %v1190
    %v1231 = vpack.c.b16 %v1195, %v1193
    %v1232 = vpack.c.b16 %v1196, %v1194
    %v1233 = vpack.c.b16 %v1199, %v1197
    %v1234 = vpack.c.b16 %v1200, %v1198
    %v1235 = vpack.c.b16 %v1203, %v1201
    %v1236 = vpack.c.b16 %v1204, %v1202
    %1269 = vmatprep.subr.bf16.mxu0 %v1206
    %1270 = vmatpush1.bf16.msra.mxu0 %v1205
    %1271 = vmatprep.subr.bf16.mxu0 %v1208
    %1272 = vmatpush1.bf16.msra.mxu0 %v1207
    %1273 = vmatprep.subr.bf16.mxu0 %v1210
    %1274 = vmatpush1.bf16.msra.mxu0 %v1209
    %1275 = vmatprep.subr.bf16.mxu0 %v1212
    %1276 = vmatpush1.bf16.msra.mxu0 %v1211
    %1277 = vmatprep.subr.bf16.mxu0 %v1214
    %1278 = vmatpush1.bf16.msra.mxu0 %v1213
    %1279 = vmatprep.subr.bf16.mxu0 %v1216
    %1280 = vmatpush1.bf16.msra.mxu0 %v1215
    %1281 = vmatprep.subr.bf16.mxu0 %v1218
    %1282 = vmatpush1.bf16.msra.mxu0 %v1217
    %1283 = vmatprep.subr.bf16.mxu0 %v1220
    %1284 = vmatpush1.bf16.msra.mxu0 %v1219
    %1285 = vmatprep.subr.bf16.mxu0 %v1222
    %1286 = vmatpush1.bf16.msra.mxu0 %v1221
    %1287 = vmatprep.subr.bf16.mxu0 %v1224
    %1288 = vmatpush1.bf16.msra.mxu0 %v1223
    %1289 = vmatprep.subr.bf16.mxu0 %v1226
    %1290 = vmatpush1.bf16.msra.mxu0 %v1225
    %1291 = vmatprep.subr.bf16.mxu0 %v1228
    %1292 = vmatpush1.bf16.msra.mxu0 %v1227
    %1293 = vmatprep.subr.bf16.mxu0 %v1230
    %1294 = vmatpush1.bf16.msra.mxu0 %v1229
    %1295 = vmatprep.subr.bf16.mxu0 %v1232
    %1296 = vmatpush1.bf16.msra.mxu0 %v1231
    %1297 = vmatprep.subr.bf16.mxu0 %v1234
    %1298 = vmatpush1.bf16.msra.mxu0 %v1233
    %1299 = vmatprep.subr.bf16.mxu0 %v1236
    %1300 = vmatpush1.bf16.msra.mxu0 %v1235
    %1301 = vmatprep.mubr.bf16.mxu0 %v1064
    %1302 = vmatmul.mubr.bf16.gmra.mrb[0].mxu0 %v1063
    %v1303 = vpop.f32.mrb[0].mxu0
    %v1304 = vadd.f32 %v1102, %v1303
    %v1305 = vpop.f32.mrb[0].mxu0
    %v1306 = vadd.f32 %v1106, %v1305
    %v1307 = vpop.f32.mrb[0].mxu0
    %v1308 = vpop.f32.mrb[0].mxu0
    %1309 = vdwg.mxu0
    %v1310 = vmax.f32 %v1304, 0.0
    %v1311 = vmax.f32 %v1306, 0.0
    %v1312 = vpack.c.bf16 %v1310, %v1310
    %v1313 = vpack.c.bf16 %v1311, %v1311
    %v1314 = vld [vmem:[%s5] sm:$0xf]
    %v1315 = vld [vmem:[%s5 + $0x4] sm:$0xf]
    %v1316 = vld [vmem:[%s5 + $0x8] sm:$0xf]
    %v1317 = vld [vmem:[%s5 + $0xc] sm:$0xf]
    %v1318 = vld [vmem:[%s5 + $0x10] sm:$0xf]
    %v1319 = vld [vmem:[%s5 + $0x14] sm:$0xf]
    %v1320 = vld [vmem:[%s5 + $0x18] sm:$0xf]
    %v1321 = vld [vmem:[%s5 + $0x1c] sm:$0xf]
    %v1322 = vld [vmem:[%s5 + $0x20] sm:$0xf]
    %v1323 = vld [vmem:[%s5 + $0x24] sm:$0xf]
    %v1324 = vld [vmem:[%s5 + $0x28] sm:$0xf]
    %v1325 = vld [vmem:[%s5 + $0x2c] sm:$0xf]
    %v1326 = vld [vmem:[%s5 + $0x30] sm:$0xf]
    %v1327 = vld [vmem:[%s5 + $0x34] sm:$0xf]
    %v1328 = vld [vmem:[%s5 + $0x38] sm:$0xf]
    %v1329 = vld [vmem:[%s5 + $0x3c] sm:$0xf]
    %v1330 = vld [vmem:[%s5 + $0x40] sm:$0xf]
    %v1331 = vld [vmem:[%s5 + $0x44] sm:$0xf]
    %v1332 = vld [vmem:[%s5 + $0x48] sm:$0xf]
    %v1333 = vld [vmem:[%s5 + $0x4c] sm:$0xf]
    %v1334 = vld [vmem:[%s5 + $0x50] sm:$0xf]
    %v1335 = vld [vmem:[%s5 + $0x54] sm:$0xf]
    %v1336 = vld [vmem:[%s5 + $0x58] sm:$0xf]
    %v1337 = vld [vmem:[%s5 + $0x5c] sm:$0xf]
    %v1338 = vld [vmem:[%s5 + $0x60] sm:$0xf]
    %v1339 = vld [vmem:[%s5 + $0x64] sm:$0xf]
    %v1340 = vld [vmem:[%s5 + $0x68] sm:$0xf]
    %v1341 = vld [vmem:[%s5 + $0x6c] sm:$0xf]
    %v1342 = vld [vmem:[%s5 + $0x70] sm:$0xf]
    %v1343 = vld [vmem:[%s5 + $0x74] sm:$0xf]
    %v1344 = vld [vmem:[%s5 + $0x78] sm:$0xf]
    %v1345 = vld [vmem:[%s5 + $0x7c] sm:$0xf]
    %v1346 = vld [vmem:[%s6] sm:$0x1]
    %v1348 = vlaneseq
    %v1349 = vshrl.u32 %v1348, 7
    %v1350 = vsub.s32 0, %v1349
    %v1351 = vrot.slane %v1346, %v1350
    %v1385 = vunpack.c.l.b16 %v1314
    %v1386 = vunpack.c.l.b16 %v1315
    %v1387 = vunpack.c.l.b16 %v1316
    %v1388 = vunpack.c.l.b16 %v1317
    %v1389 = vunpack.c.l.b16 %v1318
    %v1390 = vunpack.c.l.b16 %v1319
    %v1391 = vunpack.c.l.b16 %v1320
    %v1392 = vunpack.c.l.b16 %v1321
    %v1393 = vunpack.c.l.b16 %v1322
    %v1394 = vunpack.c.l.b16 %v1323
    %v1395 = vunpack.c.l.b16 %v1324
    %v1396 = vunpack.c.l.b16 %v1325
    %v1397 = vunpack.c.l.b16 %v1326
    %v1398 = vunpack.c.l.b16 %v1327
    %v1399 = vunpack.c.l.b16 %v1328
    %v1400 = vunpack.c.l.b16 %v1329
    %v1401 = vunpack.c.l.b16 %v1330
    %v1402 = vunpack.c.l.b16 %v1331
    %v1403 = vunpack.c.l.b16 %v1332
    %v1404 = vunpack.c.l.b16 %v1333
    %v1405 = vunpack.c.l.b16 %v1334
    %v1406 = vunpack.c.l.b16 %v1335
    %v1407 = vunpack.c.l.b16 %v1336
    %v1408 = vunpack.c.l.b16 %v1337
    %v1409 = vunpack.c.l.b16 %v1338
    %v1410 = vunpack.c.l.b16 %v1339
    %v1411 = vunpack.c.l.b16 %v1340
    %v1412 = vunpack.c.l.b16 %v1341
    %v1413 = vunpack.c.l.b16 %v1342
    %v1414 = vunpack.c.l.b16 %v1343
    %v1415 = vunpack.c.l.b16 %v1344
    %v1416 = vunpack.c.l.b16 %v1345
    %v1417 = vpack.c.b16 %v1386, %v1385
    %v1418 = vpack.c.b16 %v1388, %v1387
    %v1419 = vpack.c.b16 %v1390, %v1389
    %v1420 = vpack.c.b16 %v1392, %v1391
    %v1421 = vpack.c.b16 %v1394, %v1393
    %v1422 = vpack.c.b16 %v1396, %v1395
    %v1423 = vpack.c.b16 %v1398, %v1397
    %v1424 = vpack.c.b16 %v1400, %v1399
    %v1425 = vpack.c.b16 %v1402, %v1401
    %v1426 = vpack.c.b16 %v1404, %v1403
    %v1427 = vpack.c.b16 %v1406, %v1405
    %v1428 = vpack.c.b16 %v1408, %v1407
    %v1429 = vpack.c.b16 %v1410, %v1409
    %v1430 = vpack.c.b16 %v1412, %v1411
    %v1431 = vpack.c.b16 %v1414, %v1413
    %v1432 = vpack.c.b16 %v1416, %v1415
    %1449 = vmatprep.subr.bf16.mxu0 0
    %1450 = vmatpush1.bf16.msra.mxu0 %v1417
    %1451 = vmatprep.subr.bf16.mxu0 0
    %1452 = vmatpush1.bf16.msra.mxu0 %v1418
    %1453 = vmatprep.subr.bf16.mxu0 0
    %1454 = vmatpush1.bf16.msra.mxu0 %v1419
    %1455 = vmatprep.subr.bf16.mxu0 0
    %1456 = vmatpush1.bf16.msra.mxu0 %v1420
    %1457 = vmatprep.subr.bf16.mxu0 0
    %1458 = vmatpush1.bf16.msra.mxu0 %v1421
    %1459 = vmatprep.subr.bf16.mxu0 0
    %1460 = vmatpush1.bf16.msra.mxu0 %v1422
    %1461 = vmatprep.subr.bf16.mxu0 0
    %1462 = vmatpush1.bf16.msra.mxu0 %v1423
    %1463 = vmatprep.subr.bf16.mxu0 0
    %1464 = vmatpush1.bf16.msra.mxu0 %v1424
    %1465 = vmatprep.subr.bf16.mxu0 0
    %1466 = vmatpush1.bf16.msra.mxu0 %v1425
    %1467 = vmatprep.subr.bf16.mxu0 0
    %1468 = vmatpush1.bf16.msra.mxu0 %v1426
    %1469 = vmatprep.subr.bf16.mxu0 0
    %1470 = vmatpush1.bf16.msra.mxu0 %v1427
    %1471 = vmatprep.subr.bf16.mxu0 0
    %1472 = vmatpush1.bf16.msra.mxu0 %v1428
    %1473 = vmatprep.subr.bf16.mxu0 0
    %1474 = vmatpush1.bf16.msra.mxu0 %v1429
    %1475 = vmatprep.subr.bf16.mxu0 0
    %1476 = vmatpush1.bf16.msra.mxu0 %v1430
    %1477 = vmatprep.subr.bf16.mxu0 0
    %1478 = vmatpush1.bf16.msra.mxu0 %v1431
    %1479 = vmatprep.subr.bf16.mxu0 0
    %1480 = vmatpush1.bf16.msra.mxu0 %v1432
    %1481 = vmatprep.mubr.bf16.mxu0 %v1313
    %1482 = vmatmul.mubr.bf16.gmra.mrb[0].mxu0 %v1312
    %v1483 = vpop.f32.mrb[0].mxu0
    %v1484 = vadd.f32 %v1351, %v1483
    %v1485 = vpop.f32.mrb[0].mxu0
    %v1486 = vpop.f32.mrb[0].mxu0
    %v1487 = vpop.f32.mrb[0].mxu0
    %1488 = vdwg.mxu0
    %v1489 = vmax.f32 %v1484, 0.0
    %v1490 = vld [vmem:[%s7] sm:$0x1]
    %v1492 = vlaneseq
    %v1493 = vshrl.u32 %v1492, 7
    %v1494 = vsub.s32 0, %v1493
    %v1495 = vrot.slane %v1490, %v1494
    %v1497 = vmul.f32 %v1489, %v1495
    %vm1498 = vcmask 1041408
    %v1499 = vsel %vm1498, %v1497, 0.0
    %1500 = vadd.xlane.f32.xlu0 %v1499
    %v1501 = vpop.xlane.xlu0 %1500
    %v1502 = vld [vmem:[#allocation2] sm:$0x1]
    %v1504 = vlaneseq
    %v1505 = vshrl.u32 %v1504, 7
    %v1506 = vsub.s32 0, %v1505
    %v1507 = vrot.slane %v1502, %v1506
    %v1509 = vadd.f32 %v1501, %v1507
    %vm1510 = vcmask 1024
    %1511 = vst.msk [vmem:[%s9] sm:$0x3] %vm1510, %v1509
    // Predicated region
    $region46: #{relation_network2_forward.1} parent=1 // pred_check
      _
    $region47: #{relation_network2_forward.1} parent=1 // pred_check_branch
      %1513 = sbr.rel (0) target = $region49
    $region48: #{relation_network2_forward.1} parent=1 // pred_region
      _
    $region49: #{relation_network2_forward.1} parent=1 // pred_fallthru
      _
    // Predicated region
    $region50: #{relation_network2_forward.1} parent=1 // pred_check
      _
    $region51: #{relation_network2_forward.1} parent=1 // pred_check_branch
      %1515 = sbr.rel (0) target = $region53
    $region52: #{relation_network2_forward.1} parent=1 // pred_region
      _
    $region53: #{relation_network2_forward.1} parent=1 // pred_fallthru
      _
    %1516 = vsyncpa [#allocation4], 1
    %1517 = vsyncpa [#allocation6], 1

</llo_original>
